<compile_context>
chip_gen: v7x
topology: tpu7x:2x2x1
jax: 0.10.0
libtpu: 0.0.40
codegen_flags: <defaults>
</compile_context>

<pallas_src>
import math
import jax
import jax.numpy as jnp
from jax.experimental import pallas as pl
from jax.experimental.pallas import tpu as pltpu

_BN_EPS = 1e-5
_LANE = 128


def _round_up(n, m):
    return ((n + m - 1) // m) * m


def _make_fused_kernel(num_hidden, inv_b):
    """Fused kernel for `num_hidden` Linear+BN+ReLU layers + 1 final Linear.

    Ref layout: x, (w, gamma, beta) * num_hidden, w_out, b_out, o.
    All refs are full arrays resident in VMEM; the layer loop is unrolled at
    trace time. Matmuls run in bf16 on the MXU with f32 accumulation; BN/ReLU
    math is f32.
    """

    def kernel(*refs):
        x_ref = refs[0]
        o_ref = refs[-1]
        h = x_ref[...].astype(jnp.bfloat16)
        idx = 1
        for _ in range(num_hidden):
            w_ref, g_ref, be_ref = refs[idx], refs[idx + 1], refs[idx + 2]
            idx += 3
            # Linear (MXU, bf16 operands, f32 accumulation). Linear bias omitted:
            # it is exactly cancelled by the BN mean subtraction below (and is
            # zero-initialized anyway).
            y = jnp.dot(h, w_ref[...], preferred_element_type=jnp.float32)
            # BatchNorm1d, training mode, one-pass batch stats (biased variance),
            # folded into a single per-feature scale+shift.
            mean = jnp.sum(y, axis=0, keepdims=True) * inv_b
            mean_sq = jnp.sum(y * y, axis=0, keepdims=True) * inv_b
            var = jnp.maximum(mean_sq - mean * mean, 0.0)
            scale = g_ref[...] * jax.lax.rsqrt(var + _BN_EPS)
            shift = be_ref[...] - mean * scale
            # Affine + ReLU in f32, then narrow to bf16 for the next matmul.
            h = jnp.maximum(y * scale + shift, 0.0).astype(jnp.bfloat16)
        # Final plain Linear (bias kept in f32: no BN to cancel it).
        w_ref, b_ref = refs[idx], refs[idx + 1]
        y = jnp.dot(h, w_ref[...], preferred_element_type=jnp.float32)
        o_ref[...] = (y + b_ref[...]).astype(o_ref.dtype)

    return kernel


def init_params(key, input_size, hidden_layers, out_size):
    """Matches MLP_bn.weight_init(): xavier-uniform Linear weight, zero Linear
    bias, BN gamma=1 / beta=0. Weights stored [in_dim, out_dim] (x @ W)."""
    sizes = [input_size] + list(hidden_layers) + [out_size]
    params = []
    for in_dim, out_dim in zip(sizes[:-1], sizes[1:]):
        key, sub = jax.random.split(key)
        bound = math.sqrt(6.0 / (in_dim + out_dim))
        # PyTorch weight is [out_dim, in_dim]; sample in that shape, transpose.
        w_pt = jax.random.uniform(sub, (out_dim, in_dim), jnp.float32, -bound, bound)
        w = jnp.transpose(w_pt)                       # [in_dim, out_dim]
        b = jnp.zeros((1, out_dim), jnp.float32)      # Linear bias (zeros)
        gamma = jnp.ones((1, out_dim), jnp.float32)   # BN weight
        beta = jnp.zeros((1, out_dim), jnp.float32)   # BN bias
        params.append((w, b, gamma, beta))
    return params


def prepare_params(params):
    """One-time preparation for the fused kernel: pad every output-feature dim
    up to 128 lanes (so all stores are lane-dense), keep the first weight's row
    count equal to the true input dim, and cast weights to bf16. Padded weight
    columns are zero, so padded activations are provably zero through BN+ReLU.

    Returns (flat tuple of kernel inputs after x, true out_dim)."""
    prepared = []
    prev_p = params[0][0].shape[0]  # first weight rows stay = in_dim (unpadded)
    for (w, _b, gamma, beta) in params[:-1]:
        d_in, d_out = w.shape
        d_out_p = _round_up(d_out, _LANE)
        prepared.append(
            jnp.pad(w, ((0, prev_p - d_in), (0, d_out_p - d_out))).astype(jnp.bfloat16))
        prepared.append(jnp.pad(gamma, ((0, 0), (0, d_out_p - d_out))))
        prepared.append(jnp.pad(beta, ((0, 0), (0, d_out_p - d_out))))
        prev_p = d_out_p
    w_out, b_out, _, _ = params[-1]
    d_in, d_out = w_out.shape
    out_p = _round_up(d_out, _LANE)
    prepared.append(
        jnp.pad(w_out, ((0, prev_p - d_in), (0, out_p - d_out))).astype(jnp.bfloat16))
    prepared.append(jnp.pad(b_out, ((0, 0), (0, out_p - d_out))))
    return tuple(prepared), d_out


def mlp_bn_forward(x, prepared, out_dim):
    """Fused forward pass: one pallas_call, all (pre-padded) tensors resident in
    VMEM, lane-dense padded output store, true output width sliced afterwards."""
    num_hidden = (len(prepared) - 2) // 3
    B = x.shape[0]
    out_p = prepared[-1].shape[1]
    inputs = (x,) + tuple(prepared)

    # VMEM budget: resident inputs + padded output, 2x margin + headroom,
    # capped at 64 MiB (v7x physical VMEM per TC).
    total_bytes = sum(int(a.size) * a.dtype.itemsize for a in inputs)
    total_bytes += B * out_p * x.dtype.itemsize
    vmem_limit = min(max(2 * total_bytes + (4 << 20), 32 << 20), 64 << 20)

    vmem = pl.BlockSpec(memory_space=pltpu.MemorySpace.VMEM)
    out_padded = pl.pallas_call(
        _make_fused_kernel(num_hidden, 1.0 / B),
        out_shape=jax.ShapeDtypeStruct((B, out_p), x.dtype),
        in_specs=[vmem] * len(inputs),
        out_specs=vmem,
        compiler_params=pltpu.CompilerParams(vmem_limit_bytes=int(vmem_limit)),
    )(*inputs)
    return out_padded[:, :out_dim]


def _reference_forward(x, params):
    """Pure-JAX f32 reference replicating PyTorch MLP_bn training-mode forward."""
    h = x
    for (w, b, gamma, beta) in params[:-1]:
        y = jnp.dot(h, w, precision=jax.lax.Precision.HIGHEST) + b
        mean = jnp.mean(y, axis=0, keepdims=True)
        var = jnp.mean(jnp.square(y - mean), axis=0, keepdims=True)
        y = (y - mean) / jnp.sqrt(var + _BN_EPS) * gamma + beta
        h = jnp.maximum(y, 0.0)
    w, b, _, _ = params[-1]
    return jnp.dot(h, w, precision=jax.lax.Precision.HIGHEST) + b


if __name__ == "__main__":
    key = jax.random.PRNGKey(0)

    input_size = 16
    hidden_layers = [32, 32]
    out_size = 8
    batch = 8  # multiple of the 8-sublane f32 tile

    k_x, k_p = jax.random.split(key)
    x = jax.random.normal(k_x, (batch, input_size), jnp.float32)
    params = init_params(k_p, input_size, hidden_layers, out_size)

    # One-time parameter preparation (padding + bf16 cast) hoisted out of the
    # per-call forward path.
    prepared, true_out = prepare_params(params)

    fwd = jax.jit(mlp_bn_forward, static_argnums=2)
    out = fwd(x, prepared, true_out)
    jax.block_until_ready(out)

    assert out.shape == (batch, out_size), out.shape
    assert bool(jnp.all(jnp.isfinite(out)))

    # bf16 matmul operands with f32 accumulation -> compare against the f32
    # HIGHEST-precision reference at a bf16-appropriate tolerance.
    ref = _reference_forward(x, params)
    assert bool(jnp.allclose(out, ref, rtol=2e-2, atol=2e-2)), (
        float(jnp.max(jnp.abs(out - ref))))

    print("KERNEL_OK")
</pallas_src>

<mosaic_0001>
module attributes {stable_mosaic.version = 11 : i64} {
  func.func @kernel(%arg0: memref<8x16xf32, #tpu.memory_space<vmem>>, %arg1: memref<16x128xbf16, #tpu.memory_space<vmem>>, %arg2: memref<1x128xf32, #tpu.memory_space<vmem>>, %arg3: memref<1x128xf32, #tpu.memory_space<vmem>>, %arg4: memref<128x128xbf16, #tpu.memory_space<vmem>>, %arg5: memref<1x128xf32, #tpu.memory_space<vmem>>, %arg6: memref<1x128xf32, #tpu.memory_space<vmem>>, %arg7: memref<128x128xbf16, #tpu.memory_space<vmem>>, %arg8: memref<1x128xf32, #tpu.memory_space<vmem>>, %arg9: memref<8x128xf32, #tpu.memory_space<vmem>>) attributes {dimension_semantics = [], scalar_prefetch = 0 : i64, scratch_operands = 0 : i64, tpu.core_type = #tpu.core_type<tc>} {
    %c0 = arith.constant 0 : index
    %c0_0 = arith.constant 0 : index
    %0 = vector.load %arg0[%c0, %c0_0] : memref<8x16xf32, #tpu.memory_space<vmem>>, vector<8x16xf32>
    %1 = arith.truncf %0 : vector<8x16xf32> to vector<8x16xbf16>
    %c0_1 = arith.constant 0 : index
    %c0_2 = arith.constant 0 : index
    %2 = vector.load %arg1[%c0_1, %c0_2] : memref<16x128xbf16, #tpu.memory_space<vmem>>, vector<16x128xbf16>
    %cst = arith.constant dense<0.000000e+00> : vector<8x128xf32>
    %3 = tpu.matmul %1, %2, %cst {dimension_numbers = #tpu.dot_dimension_numbers<[1], [0], [0], [1], [0, 0, 1, 1], [], []>} : vector<8x16xbf16>, vector<16x128xbf16>, vector<8x128xf32> -> vector<8x128xf32>
    %cst_3 = arith.constant dense<0.000000e+00> : vector<128xf32>
    %4 = vector.multi_reduction <add>, %3, %cst_3 [0] : vector<8x128xf32> to vector<128xf32>
    %5 = vector.shape_cast %4 : vector<128xf32> to vector<1x128xf32>
    %cst_4 = arith.constant 1.250000e-01 : f32
    %6 = vector.broadcast %cst_4 : f32 to vector<1x128xf32>
    %7 = arith.mulf %5, %6 : vector<1x128xf32>
    %8 = arith.mulf %3, %3 : vector<8x128xf32>
    %cst_5 = arith.constant dense<0.000000e+00> : vector<128xf32>
    %9 = vector.multi_reduction <add>, %8, %cst_5 [0] : vector<8x128xf32> to vector<128xf32>
    %10 = vector.shape_cast %9 : vector<128xf32> to vector<1x128xf32>
    %cst_6 = arith.constant 1.250000e-01 : f32
    %11 = vector.broadcast %cst_6 : f32 to vector<1x128xf32>
    %12 = arith.mulf %10, %11 : vector<1x128xf32>
    %13 = arith.mulf %7, %7 : vector<1x128xf32>
    %14 = arith.subf %12, %13 : vector<1x128xf32>
    %cst_7 = arith.constant 0.000000e+00 : f32
    %15 = vector.broadcast %cst_7 : f32 to vector<1x128xf32>
    %16 = arith.maximumf %14, %15 : vector<1x128xf32>
    %c0_8 = arith.constant 0 : index
    %c0_9 = arith.constant 0 : index
    %17 = vector.load %arg2[%c0_8, %c0_9] : memref<1x128xf32, #tpu.memory_space<vmem>>, vector<1x128xf32>
    %cst_10 = arith.constant 9.99999974E-6 : f32
    %18 = vector.broadcast %cst_10 : f32 to vector<1x128xf32>
    %19 = arith.addf %16, %18 : vector<1x128xf32>
    %20 = math.rsqrt %19 : vector<1x128xf32>
    %21 = arith.mulf %17, %20 : vector<1x128xf32>
    %c0_11 = arith.constant 0 : index
    %c0_12 = arith.constant 0 : index
    %22 = vector.load %arg3[%c0_11, %c0_12] : memref<1x128xf32, #tpu.memory_space<vmem>>, vector<1x128xf32>
    %23 = arith.mulf %7, %21 : vector<1x128xf32>
    %24 = arith.subf %22, %23 : vector<1x128xf32>
    %25 = vector.broadcast %21 : vector<1x128xf32> to vector<8x128xf32>
    %26 = arith.mulf %3, %25 : vector<8x128xf32>
    %27 = vector.broadcast %24 : vector<1x128xf32> to vector<8x128xf32>
    %28 = arith.addf %26, %27 : vector<8x128xf32>
    %cst_13 = arith.constant 0.000000e+00 : f32
    %29 = vector.broadcast %cst_13 : f32 to vector<8x128xf32>
    %30 = arith.maximumf %28, %29 : vector<8x128xf32>
    %31 = arith.truncf %30 : vector<8x128xf32> to vector<8x128xbf16>
    %c0_14 = arith.constant 0 : index
    %c0_15 = arith.constant 0 : index
    %32 = vector.load %arg4[%c0_14, %c0_15] : memref<128x128xbf16, #tpu.memory_space<vmem>>, vector<128x128xbf16>
    %cst_16 = arith.constant dense<0.000000e+00> : vector<8x128xf32>
    %33 = tpu.matmul %31, %32, %cst_16 {dimension_numbers = #tpu.dot_dimension_numbers<[1], [0], [0], [1], [0, 0, 1, 1], [], []>} : vector<8x128xbf16>, vector<128x128xbf16>, vector<8x128xf32> -> vector<8x128xf32>
    %cst_17 = arith.constant dense<0.000000e+00> : vector<128xf32>
    %34 = vector.multi_reduction <add>, %33, %cst_17 [0] : vector<8x128xf32> to vector<128xf32>
    %35 = vector.shape_cast %34 : vector<128xf32> to vector<1x128xf32>
    %cst_18 = arith.constant 1.250000e-01 : f32
    %36 = vector.broadcast %cst_18 : f32 to vector<1x128xf32>
    %37 = arith.mulf %35, %36 : vector<1x128xf32>
    %38 = arith.mulf %33, %33 : vector<8x128xf32>
    %cst_19 = arith.constant dense<0.000000e+00> : vector<128xf32>
    %39 = vector.multi_reduction <add>, %38, %cst_19 [0] : vector<8x128xf32> to vector<128xf32>
    %40 = vector.shape_cast %39 : vector<128xf32> to vector<1x128xf32>
    %cst_20 = arith.constant 1.250000e-01 : f32
    %41 = vector.broadcast %cst_20 : f32 to vector<1x128xf32>
    %42 = arith.mulf %40, %41 : vector<1x128xf32>
    %43 = arith.mulf %37, %37 : vector<1x128xf32>
    %44 = arith.subf %42, %43 : vector<1x128xf32>
    %cst_21 = arith.constant 0.000000e+00 : f32
    %45 = vector.broadcast %cst_21 : f32 to vector<1x128xf32>
    %46 = arith.maximumf %44, %45 : vector<1x128xf32>
    %c0_22 = arith.constant 0 : index
    %c0_23 = arith.constant 0 : index
    %47 = vector.load %arg5[%c0_22, %c0_23] : memref<1x128xf32, #tpu.memory_space<vmem>>, vector<1x128xf32>
    %cst_24 = arith.constant 9.99999974E-6 : f32
    %48 = vector.broadcast %cst_24 : f32 to vector<1x128xf32>
    %49 = arith.addf %46, %48 : vector<1x128xf32>
    %50 = math.rsqrt %49 : vector<1x128xf32>
    %51 = arith.mulf %47, %50 : vector<1x128xf32>
    %c0_25 = arith.constant 0 : index
    %c0_26 = arith.constant 0 : index
    %52 = vector.load %arg6[%c0_25, %c0_26] : memref<1x128xf32, #tpu.memory_space<vmem>>, vector<1x128xf32>
    %53 = arith.mulf %37, %51 : vector<1x128xf32>
    %54 = arith.subf %52, %53 : vector<1x128xf32>
    %55 = vector.broadcast %51 : vector<1x128xf32> to vector<8x128xf32>
    %56 = arith.mulf %33, %55 : vector<8x128xf32>
    %57 = vector.broadcast %54 : vector<1x128xf32> to vector<8x128xf32>
    %58 = arith.addf %56, %57 : vector<8x128xf32>
    %cst_27 = arith.constant 0.000000e+00 : f32
    %59 = vector.broadcast %cst_27 : f32 to vector<8x128xf32>
    %60 = arith.maximumf %58, %59 : vector<8x128xf32>
    %61 = arith.truncf %60 : vector<8x128xf32> to vector<8x128xbf16>
    %c0_28 = arith.constant 0 : index
    %c0_29 = arith.constant 0 : index
    %62 = vector.load %arg7[%c0_28, %c0_29] : memref<128x128xbf16, #tpu.memory_space<vmem>>, vector<128x128xbf16>
    %cst_30 = arith.constant dense<0.000000e+00> : vector<8x128xf32>
    %63 = tpu.matmul %61, %62, %cst_30 {dimension_numbers = #tpu.dot_dimension_numbers<[1], [0], [0], [1], [0, 0, 1, 1], [], []>} : vector<8x128xbf16>, vector<128x128xbf16>, vector<8x128xf32> -> vector<8x128xf32>
    %c0_31 = arith.constant 0 : index
    %c0_32 = arith.constant 0 : index
    %64 = vector.load %arg8[%c0_31, %c0_32] : memref<1x128xf32, #tpu.memory_space<vmem>>, vector<1x128xf32>
    %65 = vector.broadcast %64 : vector<1x128xf32> to vector<8x128xf32>
    %66 = arith.addf %63, %65 : vector<8x128xf32>
    %c0_33 = arith.constant 0 : index
    %c0_34 = arith.constant 0 : index
    %67 = vector.load %arg9[%c0_33, %c0_34] : memref<8x128xf32, #tpu.memory_space<vmem>>, vector<8x128xf32>
    tpu.vector_store %arg9[%c0_33, %c0_34], %66 {strides = array<i32>} : memref<8x128xf32, #tpu.memory_space<vmem>>, vector<8x128xf32>,
    return
  }
}

</mosaic_0001>

<llo_original>
// kernel: mlp_bn_forward.1
$region0: #{mlp_bn_forward.1}
  #allocation0 [shape = 'u32[]', space=smem, size = 0x4, offset = 0x4, fixed_abs, tag = 'smem constant byte address 0x4 - core index']
  #allocation1 [shape = 'u32[144,128]{1,0:T(1,128)}', space=vmem, size = 0x12000, scoped, tag = 'internal scratch']
  %s0 = inlined_call_operand.hbm [shape: f32[8,16], index: 0, kind: input, shape index: {}]
  %s1 = inlined_call_operand.hbm [shape: bf16[16,128], index: 1, kind: input, shape index: {}]
  %s2 = inlined_call_operand.vmem [shape: f32[1,128], index: 2, kind: input, shape index: {}]
  %s3 = inlined_call_operand.vmem [shape: f32[1,128], index: 3, kind: input, shape index: {}]
  %s4 = inlined_call_operand.hbm [shape: bf16[128,128], index: 4, kind: input, shape index: {}]
  %s5 = inlined_call_operand.vmem [shape: f32[1,128], index: 5, kind: input, shape index: {}]
  %s6 = inlined_call_operand.vmem [shape: f32[1,128], index: 6, kind: input, shape index: {}]
  %s7 = inlined_call_operand.hbm [shape: bf16[128,128], index: 7, kind: input, shape index: {}]
  %s8 = inlined_call_operand.vmem [shape: f32[1,128], index: 8, kind: input, shape index: {}]
  %s9 = inlined_call_operand.hbm [shape: f32[8,128], index: 9, kind: output, shape index: {}]
  %s10 = sld [smem:[#allocation0]]
  $region62: #{mlp_bn_forward.1} parent=0
    _
  %s12 = ssub.s32 1, %s10
  %s13 = scalar_select 0, %s12, %s10
  $region1: #{mlp_bn_forward.1} parent=0
    #allocation2 [shape = 'u8[4096]{0}', space=vmem, size = 0x1000, scoped, tag = 'input window, operand 0, single buffered']
    #allocation3 [shape = 's32[1]{0}', space=sflag, size = 0x4, scoped, tag = 'scoped memory for mlp_bn_forward.1']
    #allocation4 [shape = 's32[1]{0}', space=sflag, size = 0x4, scoped, tag = 'scoped memory for mlp_bn_forward.1']
    #allocation5 [shape = 'u8[4096]{0}', space=vmem, size = 0x1000, scoped, tag = 'input window, operand 1, single buffered']
    #allocation6 [shape = 's32[1]{0}', space=sflag, size = 0x4, scoped, tag = 'scoped memory for mlp_bn_forward.1']
    #allocation7 [shape = 'u8[32768]{0}', space=vmem, size = 0x8000, scoped, tag = 'input window, operand 4, single buffered']
    #allocation8 [shape = 'u8[32768]{0}', space=vmem, size = 0x8000, scoped, tag = 'input window, operand 7, single buffered']
    #allocation9 [shape = 's32[1]{0}', space=sflag, size = 0x4, scoped, tag = 'scoped memory for mlp_bn_forward.1']
    #allocation10 [shape = 'u8[4096]{0}', space=vmem, size = 0x1000, scoped, tag = 'output window, operand 0, single buffered']
    %14 = vsyncpa [#allocation3], 0
    %15 = vsyncpa [#allocation6], 0
    %16 = vsyncpa [#allocation9], 0
    %17 = vsyncpa [#allocation4], 0
    // Predicated region
    $region2: #{mlp_bn_forward.1} parent=1 // pred_check
      _
    $region3: #{mlp_bn_forward.1} parent=1 // pred_check_branch
      %19 = sbr.rel (0) target = $region5
    $region4: #{mlp_bn_forward.1} parent=1 // pred_region
      %s21 = ssub.s32 128, 128
      %22 = vsyncadd [#allocation3], %s21
      %s24 = sshll.u32 [#allocation2], 4
      %s25 = int_to_ptr.vmem [resolvable:$true] %s24
      %27 = dma.hbm_to_vmem [thread:$0]  %s0, 128, %s25, [#allocation3]
    $region5: #{mlp_bn_forward.1} parent=1 // pred_fallthru
      _
    // Predicated region
    $region6: #{mlp_bn_forward.1} parent=1 // pred_check
      _
    $region7: #{mlp_bn_forward.1} parent=1 // pred_check_branch
      %29 = sbr.rel (0) target = $region9
    $region8: #{mlp_bn_forward.1} parent=1 // pred_region
      %s31 = ssub.s32 128, 128
      %32 = vsyncadd [#allocation6], %s31
      %s33 = sshll.u32 [#allocation5], 4
      %s34 = int_to_ptr.vmem [resolvable:$true] %s33
      %39 = dma.hbm_to_vmem [thread:$0]  %s1, 128, %s34, [#allocation6], 64, 64, 4
    $region9: #{mlp_bn_forward.1} parent=1 // pred_fallthru
      _
    // Predicated region
    $region10: #{mlp_bn_forward.1} parent=1 // pred_check
      _
    $region11: #{mlp_bn_forward.1} parent=1 // pred_check_branch
      %41 = sbr.rel (0) target = $region13
    $region12: #{mlp_bn_forward.1} parent=1 // pred_region
      _
    $region13: #{mlp_bn_forward.1} parent=1 // pred_fallthru
      _
    // Predicated region
    $region14: #{mlp_bn_forward.1} parent=1 // pred_check
      _
    $region15: #{mlp_bn_forward.1} parent=1 // pred_check_branch
      %43 = sbr.rel (0) target = $region17
    $region16: #{mlp_bn_forward.1} parent=1 // pred_region
      _
    $region17: #{mlp_bn_forward.1} parent=1 // pred_fallthru
      _
    // Predicated region
    $region18: #{mlp_bn_forward.1} parent=1 // pred_check
      _
    $region19: #{mlp_bn_forward.1} parent=1 // pred_check_branch
      %45 = sbr.rel (0) target = $region21
    $region20: #{mlp_bn_forward.1} parent=1 // pred_region
      %s47 = ssub.s32 1024, 1024
      %48 = vsyncadd [#allocation6], %s47
      %s49 = sshll.u32 [#allocation7], 4
      %s50 = int_to_ptr.vmem [resolvable:$true] %s49
      %55 = dma.hbm_to_vmem [thread:$0]  %s4, 1024, %s50, [#allocation6], 64, 64, 4
    $region21: #{mlp_bn_forward.1} parent=1 // pred_fallthru
      _
    // Predicated region
    $region22: #{mlp_bn_forward.1} parent=1 // pred_check
      _
    $region23: #{mlp_bn_forward.1} parent=1 // pred_check_branch
      %57 = sbr.rel (0) target = $region25
    $region24: #{mlp_bn_forward.1} parent=1 // pred_region
      _
    $region25: #{mlp_bn_forward.1} parent=1 // pred_fallthru
      _
    // Predicated region
    $region26: #{mlp_bn_forward.1} parent=1 // pred_check
      _
    $region27: #{mlp_bn_forward.1} parent=1 // pred_check_branch
      %59 = sbr.rel (0) target = $region29
    $region28: #{mlp_bn_forward.1} parent=1 // pred_region
      _
    $region29: #{mlp_bn_forward.1} parent=1 // pred_fallthru
      _
    // Predicated region
    $region30: #{mlp_bn_forward.1} parent=1 // pred_check
      _
    $region31: #{mlp_bn_forward.1} parent=1 // pred_check_branch
      %61 = sbr.rel (0) target = $region33
    $region32: #{mlp_bn_forward.1} parent=1 // pred_region
      %s63 = ssub.s32 1024, 1024
      %64 = vsyncadd [#allocation9], %s63
      %s65 = sshll.u32 [#allocation8], 4
      %s66 = int_to_ptr.vmem [resolvable:$true] %s65
      %71 = dma.hbm_to_vmem [thread:$0]  %s7, 1024, %s66, [#allocation9], 64, 64, 4
    $region33: #{mlp_bn_forward.1} parent=1 // pred_fallthru
      _
    // Predicated region
    $region34: #{mlp_bn_forward.1} parent=1 // pred_check
      _
    $region35: #{mlp_bn_forward.1} parent=1 // pred_check_branch
      %73 = sbr.rel (0) target = $region37
    $region36: #{mlp_bn_forward.1} parent=1 // pred_region
      _
    $region37: #{mlp_bn_forward.1} parent=1 // pred_fallthru
      _
    // Predicated region
    $region38: #{mlp_bn_forward.1} parent=1 // pred_check
      _
    $region39: #{mlp_bn_forward.1} parent=1 // pred_check_branch
      %75 = sbr.rel (0) target = $region41
    $region40: #{mlp_bn_forward.1} parent=1 // pred_region
      %76 = dma.done [#allocation3], 128
    $region41: #{mlp_bn_forward.1} parent=1 // pred_fallthru
      _
    // Predicated region
    $region42: #{mlp_bn_forward.1} parent=1 // pred_check
      _
    $region43: #{mlp_bn_forward.1} parent=1 // pred_check_branch
      %78 = sbr.rel (0) target = $region45
    $region44: #{mlp_bn_forward.1} parent=1 // pred_region
      %79 = dma.done [#allocation6], 128
    $region45: #{mlp_bn_forward.1} parent=1 // pred_fallthru
      _
    // Predicated region
    $region46: #{mlp_bn_forward.1} parent=1 // pred_check
      _
    $region47: #{mlp_bn_forward.1} parent=1 // pred_check_branch
      %81 = sbr.rel (0) target = $region49
    $region48: #{mlp_bn_forward.1} parent=1 // pred_region
      %82 = dma.done [#allocation6], 1024
    $region49: #{mlp_bn_forward.1} parent=1 // pred_fallthru
      _
    // Predicated region
    $region50: #{mlp_bn_forward.1} parent=1 // pred_check
      _
    $region51: #{mlp_bn_forward.1} parent=1 // pred_check_branch
      %84 = sbr.rel (0) target = $region53
    $region52: #{mlp_bn_forward.1} parent=1 // pred_region
      %85 = dma.done [#allocation9], 1024
    $region53: #{mlp_bn_forward.1} parent=1 // pred_fallthru
      _
    %v87 = vld [vmem:[#allocation2] sm:$0xff]
    %v88 = vpack.c.bf16 %v87, %v87
    %v89 = vld [vmem:[#allocation5] sm:$0xf]
    %v90 = vld [vmem:[#allocation5 + $0x4] sm:$0xf]
    %v93 = vunpack.c.l.b16 %v89
    %v94 = vunpack.c.l.b16 %v90
    %v95 = vpack.c.b16 %v94, %v93
    %vm97 = vcmask 130048
    %v99 = vsel %vm97, %v88, 0
    %101 = vmatprep.subr.bf16.mxu0 0
    %102 = vmatpush1.bf16.msra.mxu0 %v95
    %103 = vmatprep.subr.bf16.mxu0 0
    %104 = vmatpush1.bf16.msra.mxu0 0
    %105 = vmatprep.subr.bf16.mxu0 0
    %106 = vmatpush1.bf16.msra.mxu0 0
    %107 = vmatprep.subr.bf16.mxu0 0
    %108 = vmatpush1.bf16.msra.mxu0 0
    %109 = vmatprep.subr.bf16.mxu0 0
    %110 = vmatpush1.bf16.msra.mxu0 0
    %111 = vmatprep.subr.bf16.mxu0 0
    %112 = vmatpush1.bf16.msra.mxu0 0
    %113 = vmatprep.subr.bf16.mxu0 0
    %114 = vmatpush1.bf16.msra.mxu0 0
    %115 = vmatprep.subr.bf16.mxu0 0
    %116 = vmatpush1.bf16.msra.mxu0 0
    %117 = vmatprep.subr.bf16.mxu0 0
    %118 = vmatpush1.bf16.msra.mxu0 0
    %119 = vmatprep.subr.bf16.mxu0 0
    %120 = vmatpush1.bf16.msra.mxu0 0
    %121 = vmatprep.subr.bf16.mxu0 0
    %122 = vmatpush1.bf16.msra.mxu0 0
    %123 = vmatprep.subr.bf16.mxu0 0
    %124 = vmatpush1.bf16.msra.mxu0 0
    %125 = vmatprep.subr.bf16.mxu0 0
    %126 = vmatpush1.bf16.msra.mxu0 0
    %127 = vmatprep.subr.bf16.mxu0 0
    %128 = vmatpush1.bf16.msra.mxu0 0
    %129 = vmatprep.subr.bf16.mxu0 0
    %130 = vmatpush1.bf16.msra.mxu0 0
    %131 = vmatprep.subr.bf16.mxu0 0
    %132 = vmatpush1.bf16.msra.mxu0 0
    %133 = vmatprep.mubr.bf16.mxu0 0
    %134 = vmatmul.mubr.bf16.gmra.mrb[0].mxu0 %v99
    %v135 = vpop.f32.mrb[0].mxu0
    %v136 = vadd.f32 0.0, %v135
    %v137 = vpop.f32.mrb[0].mxu0
    %v138 = vpop.f32.mrb[0].mxu0
    %v139 = vpop.f32.mrb[0].mxu0
    %140 = vdwg.mxu0
    %v141 = vrot.slane %v136, 4
    %v142 = vadd.f32 %v136, %v141
    %v143 = vrot.slane %v142, 2
    %v144 = vadd.f32 %v142, %v143
    %v145 = vrot.slane %v144, 1
    %v146 = vadd.f32 %v144, %v145
    %v147 = vmul.f32 %v146, 0.125
    %v148 = vmul.f32 %v136, %v136
    %v149 = vrot.slane %v148, 4
    %v150 = vadd.f32 %v148, %v149
    %v151 = vrot.slane %v150, 2
    %v152 = vadd.f32 %v150, %v151
    %v153 = vrot.slane %v152, 1
    %v154 = vadd.f32 %v152, %v153
    %v155 = vmul.f32 %v154, 0.125
    %v156 = vmul.f32 %v147, %v147
    %v157 = vsub.f32 %v155, %v156
    %v158 = vmax.f32 %v157, 0.0
    %v159 = vld [vmem:[%s2] sm:$0x1]
    %v160 = vadd.f32 %v158, 1e-05
    %v161 = vrsqrt.pop %v160
    %v162 = vmul.f32 %v159, %v161
    %v163 = vld [vmem:[%s3] sm:$0x1]
    %v164 = vmul.f32 %v147, %v162
    %v165 = vsub.f32 %v163, %v164
    %v167 = vlaneseq
    %v168 = vshrl.u32 %v167, 7
    %v169 = vsub.s32 0, %v168
    %v170 = vrot.slane %v162, %v169
    %v172 = vmul.f32 %v136, %v170
    %v174 = vlaneseq
    %v175 = vshrl.u32 %v174, 7
    %v176 = vsub.s32 0, %v175
    %v177 = vrot.slane %v165, %v176
    %v179 = vadd.f32 %v172, %v177
    %v180 = vmax.f32 %v179, 0.0
    %v181 = vpack.c.bf16 %v180, %v180
    %v182 = vld [vmem:[#allocation7] sm:$0xf]
    %v183 = vld [vmem:[#allocation7 + $0x4] sm:$0xf]
    %v184 = vld [vmem:[#allocation7 + $0x8] sm:$0xf]
    %v185 = vld [vmem:[#allocation7 + $0xc] sm:$0xf]
    %v186 = vld [vmem:[#allocation7 + $0x10] sm:$0xf]
    %v187 = vld [vmem:[#allocation7 + $0x14] sm:$0xf]
    %v188 = vld [vmem:[#allocation7 + $0x18] sm:$0xf]
    %v189 = vld [vmem:[#allocation7 + $0x1c] sm:$0xf]
    %v190 = vld [vmem:[#allocation7 + $0x20] sm:$0xf]
    %v191 = vld [vmem:[#allocation7 + $0x24] sm:$0xf]
    %v192 = vld [vmem:[#allocation7 + $0x28] sm:$0xf]
    %v193 = vld [vmem:[#allocation7 + $0x2c] sm:$0xf]
    %v194 = vld [vmem:[#allocation7 + $0x30] sm:$0xf]
    %v195 = vld [vmem:[#allocation7 + $0x34] sm:$0xf]
    %v196 = vld [vmem:[#allocation7 + $0x38] sm:$0xf]
    %v197 = vld [vmem:[#allocation7 + $0x3c] sm:$0xf]
    %v214 = vunpack.c.l.b16 %v182
    %v215 = vunpack.c.l.b16 %v183
    %v216 = vunpack.c.l.b16 %v184
    %v217 = vunpack.c.l.b16 %v185
    %v218 = vunpack.c.l.b16 %v186
    %v219 = vunpack.c.l.b16 %v187
    %v220 = vunpack.c.l.b16 %v188
    %v221 = vunpack.c.l.b16 %v189
    %v222 = vunpack.c.l.b16 %v190
    %v223 = vunpack.c.l.b16 %v191
    %v224 = vunpack.c.l.b16 %v192
    %v225 = vunpack.c.l.b16 %v193
    %v226 = vunpack.c.l.b16 %v194
    %v227 = vunpack.c.l.b16 %v195
    %v228 = vunpack.c.l.b16 %v196
    %v229 = vunpack.c.l.b16 %v197
    %v230 = vpack.c.b16 %v215, %v214
    %v231 = vpack.c.b16 %v217, %v216
    %v232 = vpack.c.b16 %v219, %v218
    %v233 = vpack.c.b16 %v221, %v220
    %v234 = vpack.c.b16 %v223, %v222
    %v235 = vpack.c.b16 %v225, %v224
    %v236 = vpack.c.b16 %v227, %v226
    %v237 = vpack.c.b16 %v229, %v228
    %246 = vmatprep.subr.bf16.mxu0 0
    %247 = vmatpush1.bf16.msra.mxu0 %v230
    %248 = vmatprep.subr.bf16.mxu0 0
    %249 = vmatpush1.bf16.msra.mxu0 %v231
    %250 = vmatprep.subr.bf16.mxu0 0
    %251 = vmatpush1.bf16.msra.mxu0 %v232
    %252 = vmatprep.subr.bf16.mxu0 0
    %253 = vmatpush1.bf16.msra.mxu0 %v233
    %254 = vmatprep.subr.bf16.mxu0 0
    %255 = vmatpush1.bf16.msra.mxu0 %v234
    %256 = vmatprep.subr.bf16.mxu0 0
    %257 = vmatpush1.bf16.msra.mxu0 %v235
    %258 = vmatprep.subr.bf16.mxu0 0
    %259 = vmatpush1.bf16.msra.mxu0 %v236
    %260 = vmatprep.subr.bf16.mxu0 0
    %261 = vmatpush1.bf16.msra.mxu0 %v237
    %262 = vmatprep.subr.bf16.mxu0 0
    %263 = vmatpush1.bf16.msra.mxu0 0
    %264 = vmatprep.subr.bf16.mxu0 0
    %265 = vmatpush1.bf16.msra.mxu0 0
    %266 = vmatprep.subr.bf16.mxu0 0
    %267 = vmatpush1.bf16.msra.mxu0 0
    %268 = vmatprep.subr.bf16.mxu0 0
    %269 = vmatpush1.bf16.msra.mxu0 0
    %270 = vmatprep.subr.bf16.mxu0 0
    %271 = vmatpush1.bf16.msra.mxu0 0
    %272 = vmatprep.subr.bf16.mxu0 0
    %273 = vmatpush1.bf16.msra.mxu0 0
    %274 = vmatprep.subr.bf16.mxu0 0
    %275 = vmatpush1.bf16.msra.mxu0 0
    %276 = vmatprep.subr.bf16.mxu0 0
    %277 = vmatpush1.bf16.msra.mxu0 0
    %278 = vmatprep.mubr.bf16.mxu0 0
    %279 = vmatmul.mubr.bf16.gmra.mrb[0].mxu0 %v181
    %v280 = vpop.f32.mrb[0].mxu0
    %v281 = vadd.f32 0.0, %v280
    %v282 = vpop.f32.mrb[0].mxu0
    %v283 = vpop.f32.mrb[0].mxu0
    %v284 = vpop.f32.mrb[0].mxu0
    %285 = vdwg.mxu0
    %v286 = vrot.slane %v281, 4
    %v287 = vadd.f32 %v281, %v286
    %v288 = vrot.slane %v287, 2
    %v289 = vadd.f32 %v287, %v288
    %v290 = vrot.slane %v289, 1
    %v291 = vadd.f32 %v289, %v290
    %v292 = vmul.f32 %v291, 0.125
    %v293 = vmul.f32 %v281, %v281
    %v294 = vrot.slane %v293, 4
    %v295 = vadd.f32 %v293, %v294
    %v296 = vrot.slane %v295, 2
    %v297 = vadd.f32 %v295, %v296
    %v298 = vrot.slane %v297, 1
    %v299 = vadd.f32 %v297, %v298
    %v300 = vmul.f32 %v299, 0.125
    %v301 = vmul.f32 %v292, %v292
    %v302 = vsub.f32 %v300, %v301
    %v303 = vmax.f32 %v302, 0.0
    %v304 = vld [vmem:[%s5] sm:$0x1]
    %v305 = vadd.f32 %v303, 1e-05
    %v306 = vrsqrt.pop %v305
    %v307 = vmul.f32 %v304, %v306
    %v308 = vld [vmem:[%s6] sm:$0x1]
    %v309 = vmul.f32 %v292, %v307
    %v310 = vsub.f32 %v308, %v309
    %v312 = vlaneseq
    %v313 = vshrl.u32 %v312, 7
    %v314 = vsub.s32 0, %v313
    %v315 = vrot.slane %v307, %v314
    %v317 = vmul.f32 %v281, %v315
    %v319 = vlaneseq
    %v320 = vshrl.u32 %v319, 7
    %v321 = vsub.s32 0, %v320
    %v322 = vrot.slane %v310, %v321
    %v324 = vadd.f32 %v317, %v322
    %v325 = vmax.f32 %v324, 0.0
    %v326 = vpack.c.bf16 %v325, %v325
    %v327 = vld [vmem:[#allocation8] sm:$0xf]
    %v328 = vld [vmem:[#allocation8 + $0x4] sm:$0xf]
    %v329 = vld [vmem:[#allocation8 + $0x8] sm:$0xf]
    %v330 = vld [vmem:[#allocation8 + $0xc] sm:$0xf]
    %v331 = vld [vmem:[#allocation8 + $0x10] sm:$0xf]
    %v332 = vld [vmem:[#allocation8 + $0x14] sm:$0xf]
    %v333 = vld [vmem:[#allocation8 + $0x18] sm:$0xf]
    %v334 = vld [vmem:[#allocation8 + $0x1c] sm:$0xf]
    %v335 = vld [vmem:[#allocation8 + $0x20] sm:$0xf]
    %v336 = vld [vmem:[#allocation8 + $0x24] sm:$0xf]
    %v337 = vld [vmem:[#allocation8 + $0x28] sm:$0xf]
    %v338 = vld [vmem:[#allocation8 + $0x2c] sm:$0xf]
    %v339 = vld [vmem:[#allocation8 + $0x30] sm:$0xf]
    %v340 = vld [vmem:[#allocation8 + $0x34] sm:$0xf]
    %v341 = vld [vmem:[#allocation8 + $0x38] sm:$0xf]
    %v342 = vld [vmem:[#allocation8 + $0x3c] sm:$0xf]
    %v343 = vld [vmem:[%s8] sm:$0x1]
    %v345 = vlaneseq
    %v346 = vshrl.u32 %v345, 7
    %v347 = vsub.s32 0, %v346
    %v348 = vrot.slane %v343, %v347
    %v366 = vunpack.c.l.b16 %v327
    %v367 = vunpack.c.l.b16 %v328
    %v368 = vunpack.c.l.b16 %v329
    %v369 = vunpack.c.l.b16 %v330
    %v370 = vunpack.c.l.b16 %v331
    %v371 = vunpack.c.l.b16 %v332
    %v372 = vunpack.c.l.b16 %v333
    %v373 = vunpack.c.l.b16 %v334
    %v374 = vunpack.c.l.b16 %v335
    %v375 = vunpack.c.l.b16 %v336
    %v376 = vunpack.c.l.b16 %v337
    %v377 = vunpack.c.l.b16 %v338
    %v378 = vunpack.c.l.b16 %v339
    %v379 = vunpack.c.l.b16 %v340
    %v380 = vunpack.c.l.b16 %v341
    %v381 = vunpack.c.l.b16 %v342
    %v382 = vpack.c.b16 %v367, %v366
    %v383 = vpack.c.b16 %v369, %v368
    %v384 = vpack.c.b16 %v371, %v370
    %v385 = vpack.c.b16 %v373, %v372
    %v386 = vpack.c.b16 %v375, %v374
    %v387 = vpack.c.b16 %v377, %v376
    %v388 = vpack.c.b16 %v379, %v378
    %v389 = vpack.c.b16 %v381, %v380
    %398 = vmatprep.subr.bf16.mxu0 0
    %399 = vmatpush1.bf16.msra.mxu0 %v382
    %400 = vmatprep.subr.bf16.mxu0 0
    %401 = vmatpush1.bf16.msra.mxu0 %v383
    %402 = vmatprep.subr.bf16.mxu0 0
    %403 = vmatpush1.bf16.msra.mxu0 %v384
    %404 = vmatprep.subr.bf16.mxu0 0
    %405 = vmatpush1.bf16.msra.mxu0 %v385
    %406 = vmatprep.subr.bf16.mxu0 0
    %407 = vmatpush1.bf16.msra.mxu0 %v386
    %408 = vmatprep.subr.bf16.mxu0 0
    %409 = vmatpush1.bf16.msra.mxu0 %v387
    %410 = vmatprep.subr.bf16.mxu0 0
    %411 = vmatpush1.bf16.msra.mxu0 %v388
    %412 = vmatprep.subr.bf16.mxu0 0
    %413 = vmatpush1.bf16.msra.mxu0 %v389
    %414 = vmatprep.subr.bf16.mxu0 0
    %415 = vmatpush1.bf16.msra.mxu0 0
    %416 = vmatprep.subr.bf16.mxu0 0
    %417 = vmatpush1.bf16.msra.mxu0 0
    %418 = vmatprep.subr.bf16.mxu0 0
    %419 = vmatpush1.bf16.msra.mxu0 0
    %420 = vmatprep.subr.bf16.mxu0 0
    %421 = vmatpush1.bf16.msra.mxu0 0
    %422 = vmatprep.subr.bf16.mxu0 0
    %423 = vmatpush1.bf16.msra.mxu0 0
    %424 = vmatprep.subr.bf16.mxu0 0
    %425 = vmatpush1.bf16.msra.mxu0 0
    %426 = vmatprep.subr.bf16.mxu0 0
    %427 = vmatpush1.bf16.msra.mxu0 0
    %428 = vmatprep.subr.bf16.mxu0 0
    %429 = vmatpush1.bf16.msra.mxu0 0
    %430 = vmatprep.mubr.bf16.mxu0 0
    %431 = vmatmul.mubr.bf16.gmra.mrb[0].mxu0 %v326
    %v432 = vpop.f32.mrb[0].mxu0
    %v433 = vadd.f32 %v348, %v432
    %v434 = vpop.f32.mrb[0].mxu0
    %v435 = vpop.f32.mrb[0].mxu0
    %v436 = vpop.f32.mrb[0].mxu0
    %437 = vdwg.mxu0
    %438 = vst [vmem:[#allocation10] sm:$0xff] %v433
    // Predicated region
    $region54: #{mlp_bn_forward.1} parent=1 // pred_check
      _
    $region55: #{mlp_bn_forward.1} parent=1 // pred_check_branch
      %440 = sbr.rel (0) target = $region57
    $region56: #{mlp_bn_forward.1} parent=1 // pred_region
      %s442 = ssub.s32 128, 128
      %443 = vsyncadd [#allocation4], %s442
      %s445 = sshll.u32 [#allocation10], 4
      %s446 = int_to_ptr.vmem [resolvable:$true] %s445
      %448 = dma.vmem_to_hbm [thread:$0]  %s446, 128, %s9, [#allocation4]
    $region57: #{mlp_bn_forward.1} parent=1 // pred_fallthru
      _
    // Predicated region
    $region58: #{mlp_bn_forward.1} parent=1 // pred_check
      _
    $region59: #{mlp_bn_forward.1} parent=1 // pred_check_branch
      %450 = sbr.rel (0) target = $region61
    $region60: #{mlp_bn_forward.1} parent=1 // pred_region
      %451 = dma.done [#allocation4], 128
    $region61: #{mlp_bn_forward.1} parent=1 // pred_fallthru
      _
    %452 = vsyncpa [#allocation3], 1
    %453 = vsyncpa [#allocation6], 1
    %454 = vsyncpa [#allocation9], 1
    %455 = vsyncpa [#allocation4], 1

</llo_original>
